<compile_context>
chip_gen: v7x
topology: tpu7x:2x2x1
jax: 0.10.0
libtpu: 0.0.40
codegen_flags: <defaults>
</compile_context>

<pallas_src>
import functools

import jax
import jax.numpy as jnp
from jax.experimental import pallas as pl
from jax.experimental.pallas import tpu as pltpu

LANES = 128


def _focal_kernel(x_ref, t_ref, out_ref, acc_ref, *,
                  gamma, alpha_vec, hw_valid, s_tile, num_classes):
    s = pl.program_id(1)

    @pl.when(s == 0)
    def _():
        acc_ref[...] = jnp.zeros_like(acc_ref)

    t = t_ref[0]                                   # (s_tile, 128) int32 class ids

    # Per-class logit slabs, each (s_tile, 128). C is small & static -> unrolled.
    xs = [x_ref[0, c].astype(jnp.float32) for c in range(num_classes)]

    # Numerically stable log-softmax over the class axis (pure VPU ops, lane dense).
    m = xs[0]
    for c in range(1, num_classes):
        m = jnp.maximum(m, xs[c])
    sumexp = jnp.exp(xs[0] - m)
    for c in range(1, num_classes):
        sumexp = sumexp + jnp.exp(xs[c] - m)
    logse = jnp.log(sumexp)

    # gather(1, target): select chain over the (static) class axis.
    xt = xs[0]
    for c in range(1, num_classes):
        xt = jnp.where(t == c, xs[c], xt)
    logpt = (xt - m) - logse                        # (s_tile, 128)
    pt = jnp.exp(logpt)

    # at = alpha.gather(0, target); alpha is a compile-time constant vector.
    at = jnp.full(t.shape, alpha_vec[0], dtype=jnp.float32)
    for c in range(1, len(alpha_vec)):
        at = jnp.where(t == c, jnp.float32(alpha_vec[c]), at)

    one_minus_pt = 1.0 - pt
    g = float(gamma)
    if g == 2.0:
        focal = one_minus_pt * one_minus_pt         # explicit square: 2 VPU muls
    elif g == 1.0:
        focal = one_minus_pt
    elif g == 0.0:
        focal = jnp.ones_like(one_minus_pt)
    else:
        focal = one_minus_pt ** g                   # general non-integer gamma only

    loss = -(focal * (at * logpt))                  # (s_tile, 128)

    # Mask out padded lanes / partial last tile.
    sub = jax.lax.broadcasted_iota(jnp.int32, t.shape, 0)
    lane = jax.lax.broadcasted_iota(jnp.int32, t.shape, 1)
    pos = (s * s_tile + sub) * LANES + lane
    loss = jnp.where(pos < hw_valid, loss, 0.0)

    acc_ref[...] += loss                            # elementwise; no per-step reduce

    @pl.when(s == pl.num_programs(1) - 1)
    def _():
        # One sublane reduce per batch row: (s_tile, 128) -> (1, 1, 128) partials.
        out_ref[...] = jnp.sum(acc_ref[...], axis=0, keepdims=True)[None]


def focal_loss(logits_nchw, target_nhw, *, gamma=2.0, alpha=1.0,
               size_average=True, s_tile_cap=1024):
    """Pallas FocalLoss forward. logits: (N, C, H, W) float; target: (N, H, W) int."""
    N, C, H, W = logits_nchw.shape
    HW = H * W

    # alpha handling identical to the module __init__: scalar -> [alpha, 1-alpha].
    if alpha is None:
        alpha_vec = (1.0,) * C
    elif isinstance(alpha, (float, int)):
        alpha_vec = (float(alpha), 1.0 - float(alpha))
    else:
        alpha_vec = tuple(float(a) for a in alpha)

    # Free reshapes only (no transpose): pixels end up on sublane x lane axes.
    x = logits_nchw.reshape(N, C, HW)
    t = target_nhw.reshape(N, HW).astype(jnp.int32)

    HW_pad = ((HW + LANES - 1) // LANES) * LANES
    if HW_pad != HW:
        # TODO(synk): pad copy only when H*W is not a multiple of 128 (masked in-kernel).
        x = jnp.pad(x, ((0, 0), (0, 0), (0, HW_pad - HW)))
        t = jnp.pad(t, ((0, 0), (0, HW_pad - HW)))
    S = HW_pad // LANES

    x4 = x.reshape(N, C, S, LANES)                  # (N, C, S, 128)
    t3 = t.reshape(N, S, LANES)                     # (N, S, 128)

    # Sublane-block tile: full S if it fits, else a multiple-of-8 cap
    # (~1-1.5 MiB of input per grid step; double-buffered << v7x VMEM budget).
    s_tile = S if S <= s_tile_cap else s_tile_cap
    num_s = pl.cdiv(S, s_tile)

    kernel = functools.partial(
        _focal_kernel, gamma=float(gamma), alpha_vec=alpha_vec,
        hw_valid=HW, s_tile=s_tile, num_classes=C)

    partials = pl.pallas_call(
        kernel,
        out_shape=jax.ShapeDtypeStruct((N, 1, LANES), jnp.float32),
        grid_spec=pltpu.PrefetchScalarGridSpec(
            num_scalar_prefetch=0,
            grid=(N, num_s),
            in_specs=[
                pl.BlockSpec((1, C, s_tile, LANES), lambda n, s: (n, 0, s, 0)),
                pl.BlockSpec((1, s_tile, LANES), lambda n, s: (n, s, 0)),
            ],
            out_specs=pl.BlockSpec((1, 1, LANES), lambda n, s: (n, 0, 0)),
            scratch_shapes=[pltpu.VMEM((s_tile, LANES), jnp.float32)],
        ),
        compiler_params=pltpu.CompilerParams(
            dimension_semantics=("parallel", "arbitrary")),
    )(x4, t3)

    total = jnp.sum(partials)                       # tiny (N*128) reduce in JAX
    if size_average:
        return total / jnp.float32(N * HW)
    return total


def _reference(logits_nchw, target_nhw, gamma=2.0, alpha=1.0, size_average=True):
    N, C, H, W = logits_nchw.shape
    x = jnp.transpose(logits_nchw.reshape(N, C, H * W), (0, 2, 1)).reshape(-1, C)
    t = target_nhw.reshape(-1).astype(jnp.int32)
    logp = jax.nn.log_softmax(x.astype(jnp.float32), axis=1)
    logpt = jnp.take_along_axis(logp, t[:, None], axis=1)[:, 0]
    pt = jnp.exp(logpt)
    alpha_vec = jnp.array([alpha, 1.0 - alpha], dtype=jnp.float32)
    at = alpha_vec[t]
    loss = -1.0 * (1.0 - pt) ** gamma * (logpt * at)
    return loss.mean() if size_average else loss.sum()


if __name__ == "__main__":
    key = jax.random.PRNGKey(0)
    k1, k2 = jax.random.split(key)
    # Binary-classification focal loss (alpha=1 -> alpha vector [1, 0], as in the module).
    N, C, H, W = 2, 2, 16, 16
    logits = jax.random.normal(k1, (N, C, H, W), dtype=jnp.float32)
    target = jax.random.randint(k2, (N, H, W), 0, C, dtype=jnp.int32)

    out = focal_loss(logits, target)
    out = jax.block_until_ready(out)

    ref = _reference(logits, target)
    assert jnp.allclose(out, ref, atol=1e-5, rtol=1e-5), (out, ref)
    print("KERNEL_OK")
</pallas_src>

<mosaic_0001>
module attributes {stable_mosaic.version = 11 : i64} {
  func.func @_focal_kernel(%arg0: i32, %arg1: i32, %arg2: memref<1x2x2x128xf32, #tpu.memory_space<vmem>>, %arg3: memref<1x2x128xi32, #tpu.memory_space<vmem>>, %arg4: memref<1x1x128xf32, #tpu.memory_space<vmem>>, %arg5: memref<2x128xf32, #tpu.memory_space<vmem>>) attributes {dimension_semantics = [#tpu.dimension_semantics<parallel>, #tpu.dimension_semantics<arbitrary>], iteration_bounds = array<i64: 2, 1>, scalar_prefetch = 0 : i64, scratch_operands = 1 : i64, tpu.core_type = #tpu.core_type<tc>, window_params = [{transform_indices = @transform_0, window_bounds = array<i64: 1, 2, 2, 128>}, {transform_indices = @transform_1, window_bounds = array<i64: 1, 2, 128>}, {transform_indices = @transform_2, window_bounds = array<i64: 1, 1, 128>}]} {
    %c0_i32 = arith.constant 0 : i32
    %0 = arith.cmpi eq, %arg1, %c0_i32 : i32
    %1 = arith.extui %0 : i1 to i32
    %c0_i32_0 = arith.constant 0 : i32
    %2 = arith.cmpi ne, %1, %c0_i32_0 : i32
    scf.if %2 {
      %cst_21 = arith.constant 0.000000e+00 : f32
      %52 = vector.broadcast %cst_21 : f32 to vector<2x128xf32>
      %c0_22 = arith.constant 0 : index
      %c0_23 = arith.constant 0 : index
      %53 = vector.load %arg5[%c0_22, %c0_23] : memref<2x128xf32, #tpu.memory_space<vmem>>, vector<2x128xf32>
      tpu.vector_store %arg5[%c0_22, %c0_23], %52 {strides = array<i32>} : memref<2x128xf32, #tpu.memory_space<vmem>>, vector<2x128xf32>,
    } else {
    }
    %c0 = arith.constant 0 : index
    %c0_1 = arith.constant 0 : index
    %c0_2 = arith.constant 0 : index
    %3 = vector.load %arg3[%c0, %c0_1, %c0_2] : memref<1x2x128xi32, #tpu.memory_space<vmem>>, vector<1x2x128xi32>
    %4 = vector.shape_cast %3 : vector<1x2x128xi32> to vector<2x128xi32>
    %c0_3 = arith.constant 0 : index
    %c0_4 = arith.constant 0 : index
    %c0_5 = arith.constant 0 : index
    %c0_6 = arith.constant 0 : index
    %5 = vector.load %arg2[%c0_3, %c0_4, %c0_5, %c0_6] : memref<1x2x2x128xf32, #tpu.memory_space<vmem>>, vector<1x1x2x128xf32>
    %6 = vector.shape_cast %5 : vector<1x1x2x128xf32> to vector<2x128xf32>
    %c0_7 = arith.constant 0 : index
    %c1 = arith.constant 1 : index
    %c0_8 = arith.constant 0 : index
    %c0_9 = arith.constant 0 : index
    %7 = vector.load %arg2[%c0_7, %c1, %c0_8, %c0_9] : memref<1x2x2x128xf32, #tpu.memory_space<vmem>>, vector<1x1x2x128xf32>
    %8 = vector.shape_cast %7 : vector<1x1x2x128xf32> to vector<2x128xf32>
    %9 = arith.maximumf %6, %8 : vector<2x128xf32>
    %10 = arith.subf %6, %9 : vector<2x128xf32>
    %11 = math.exp %10 : vector<2x128xf32>
    %12 = arith.subf %8, %9 : vector<2x128xf32>
    %13 = math.exp %12 : vector<2x128xf32>
    %14 = arith.addf %11, %13 : vector<2x128xf32>
    %15 = math.log %14 : vector<2x128xf32>
    %c1_i32 = arith.constant 1 : i32
    %16 = vector.broadcast %c1_i32 : i32 to vector<2x128xi32>
    %17 = arith.cmpi eq, %4, %16 : vector<2x128xi32>
    %18 = arith.select %17, %8, %6 : vector<2x128xi1>, vector<2x128xf32>
    %19 = arith.subf %18, %9 : vector<2x128xf32>
    %20 = arith.subf %19, %15 : vector<2x128xf32>
    %21 = math.exp %20 : vector<2x128xf32>
    %cst = arith.constant 1.000000e+00 : f32
    %22 = vector.broadcast %cst : f32 to vector<2x128xf32>
    %c1_i32_10 = arith.constant 1 : i32
    %23 = vector.broadcast %c1_i32_10 : i32 to vector<2x128xi32>
    %24 = arith.cmpi eq, %4, %23 : vector<2x128xi32>
    %cst_11 = arith.constant 0.000000e+00 : f32
    %25 = vector.broadcast %cst_11 : f32 to vector<2x128xf32>
    %26 = arith.select %24, %25, %22 : vector<2x128xi1>, vector<2x128xf32>
    %cst_12 = arith.constant 1.000000e+00 : f32
    %27 = vector.broadcast %cst_12 : f32 to vector<2x128xf32>
    %28 = arith.subf %27, %21 : vector<2x128xf32>
    %29 = arith.mulf %28, %28 : vector<2x128xf32>
    %30 = arith.mulf %26, %20 : vector<2x128xf32>
    %31 = arith.mulf %29, %30 : vector<2x128xf32>
    %cst_13 = arith.constant 0.000000e+00 : f32
    %32 = vector.broadcast %cst_13 : f32 to vector<2x128xf32>
    %33 = arith.subf %32, %31 : vector<2x128xf32>
    %34 = tpu.iota {dimensions = array<i32: 0>} : vector<2x128xi32>
    %35 = tpu.iota {dimensions = array<i32: 1>} : vector<2x128xi32>
    %c2_i32 = arith.constant 2 : i32
    %36 = arith.muli %arg1, %c2_i32 : i32
    %37 = vector.broadcast %36 : i32 to vector<2x128xi32>
    %38 = arith.addi %37, %34 : vector<2x128xi32>
    %c128_i32 = arith.constant 128 : i32
    %39 = vector.broadcast %c128_i32 : i32 to vector<2x128xi32>
    %40 = arith.muli %38, %39 : vector<2x128xi32>
    %41 = arith.addi %40, %35 : vector<2x128xi32>
    %c256_i32 = arith.constant 256 : i32
    %42 = vector.broadcast %c256_i32 : i32 to vector<2x128xi32>
    %43 = arith.cmpi slt, %41, %42 : vector<2x128xi32>
    %cst_14 = arith.constant 0.000000e+00 : f32
    %44 = vector.broadcast %cst_14 : f32 to vector<2x128xf32>
    %45 = arith.select %43, %33, %44 : vector<2x128xi1>, vector<2x128xf32>
    %c0_15 = arith.constant 0 : index
    %c0_16 = arith.constant 0 : index
    %46 = vector.load %arg5[%c0_15, %c0_16] : memref<2x128xf32, #tpu.memory_space<vmem>>, vector<2x128xf32>
    %47 = arith.addf %46, %45 : vector<2x128xf32>
    %c0_17 = arith.constant 0 : index
    %c0_18 = arith.constant 0 : index
    %48 = vector.load %arg5[%c0_17, %c0_18] : memref<2x128xf32, #tpu.memory_space<vmem>>, vector<2x128xf32>
    tpu.vector_store %arg5[%c0_17, %c0_18], %47 {strides = array<i32>} : memref<2x128xf32, #tpu.memory_space<vmem>>, vector<2x128xf32>,
    %c0_i32_19 = arith.constant 0 : i32
    %49 = arith.cmpi eq, %arg1, %c0_i32_19 : i32
    %50 = arith.extui %49 : i1 to i32
    %c0_i32_20 = arith.constant 0 : i32
    %51 = arith.cmpi ne, %50, %c0_i32_20 : i32
    scf.if %51 {
      %c0_21 = arith.constant 0 : index
      %c0_22 = arith.constant 0 : index
      %52 = vector.load %arg5[%c0_21, %c0_22] : memref<2x128xf32, #tpu.memory_space<vmem>>, vector<2x128xf32>
      %cst_23 = arith.constant dense<0.000000e+00> : vector<128xf32>
      %53 = vector.multi_reduction <add>, %52, %cst_23 [0] : vector<2x128xf32> to vector<128xf32>
      %54 = vector.shape_cast %53 : vector<128xf32> to vector<1x128xf32>
      %55 = vector.shape_cast %54 : vector<1x128xf32> to vector<1x1x128xf32>
      %c0_24 = arith.constant 0 : index
      %c0_25 = arith.constant 0 : index
      %c0_26 = arith.constant 0 : index
      %56 = vector.load %arg4[%c0_24, %c0_25, %c0_26] : memref<1x1x128xf32, #tpu.memory_space<vmem>>, vector<1x1x128xf32>
      tpu.vector_store %arg4[%c0_24, %c0_25, %c0_26], %55 {strides = array<i32>} : memref<1x1x128xf32, #tpu.memory_space<vmem>>, vector<1x1x128xf32>,
    } else {
    }
    return
  }
  func.func @transform_0(%arg0: i32, %arg1: i32) -> (i32, i32, i32, i32) {
    %c0_i32 = arith.constant 0 : i32
    %c0_i32_0 = arith.constant 0 : i32
    %c0_i32_1 = arith.constant 0 : i32
    return %arg0, %c0_i32, %arg1, %c0_i32_0 : i32, i32, i32, i32
  }
  func.func @transform_1(%arg0: i32, %arg1: i32) -> (i32, i32, i32) {
    %c0_i32 = arith.constant 0 : i32
    %c0_i32_0 = arith.constant 0 : i32
    return %arg0, %arg1, %c0_i32 : i32, i32, i32
  }
  func.func @transform_2(%arg0: i32, %arg1: i32) -> (i32, i32, i32) {
    %c0_i32 = arith.constant 0 : i32
    %c0_i32_0 = arith.constant 0 : i32
    %c0_i32_1 = arith.constant 0 : i32
    return %arg0, %c0_i32, %c0_i32_0 : i32, i32, i32
  }
}

</mosaic_0001>

<llo_original>
// kernel: tpu_custom_call.1
$region0: #{tpu_custom_call.1}
  #allocation0 [shape = 'u32[]', space=smem, size = 0x4, offset = 0x4, fixed_abs, tag = 'smem constant byte address 0x4 - core index']
  #allocation1 [shape = 'u32[144,128]{1,0:T(1,128)}', space=vmem, size = 0x12000, scoped, tag = 'internal scratch']
  #allocation2 [shape = 'f32[2,128]{1,0:T(2,128)}', space=vmem, size = 0x400, scoped, tag = 'scratch operand']
  %s0 = inlined_call_operand.hbm [shape: f32[2,2,2,128], index: 0, kind: input, shape index: {}]
  %s1 = inlined_call_operand.hbm [shape: s32[2,2,128], index: 1, kind: input, shape index: {}]
  %s2 = inlined_call_operand.hbm [shape: f32[2,1,128], index: 2, kind: output, shape index: {}]
  %s3 = sld [smem:[#allocation0]]
  $region57: #{tpu_custom_call.1} parent=0
    _
  %s5 = ssub.s32 1, %s3
  %s6 = scalar_select 0, %s5, %s3
  $region1: #{tpu_custom_call.1} parent=0
    #allocation3 [shape = 'u8[4096]{0}', space=vmem, size = 0x1000, scoped, tag = 'input window, operand 0']
    #allocation4 [shape = 's32[2]{0}', space=sflag, size = 0x8, scoped, tag = 'scoped memory for tpu_custom_call.1']
    #allocation5 [shape = 's32[2]{0}', space=sflag, size = 0x8, scoped, tag = 'scoped memory for tpu_custom_call.1']
    #allocation6 [shape = 'u8[2048]{0}', space=vmem, size = 0x800, scoped, tag = 'input window, operand 1']
    #allocation7 [shape = 's32[2]{0}', space=sflag, size = 0x8, scoped, tag = 'scoped memory for tpu_custom_call.1']
    #allocation8 [shape = 'u8[1024]{0}', space=vmem, size = 0x400, scoped, tag = 'output window, operand 0']
    %7 = vsyncpa [#allocation4], 0
    %s8 = scalar_lea.sflag [#allocation4], 1
    %9 = vsyncpa %s8, 0
    %10 = vsyncpa [#allocation7], 0
    %s11 = scalar_lea.sflag [#allocation7], 1
    %12 = vsyncpa %s11, 0
    %13 = vsyncpa [#allocation5], 0
    %s14 = scalar_lea.sflag [#allocation5], 1
    %15 = vsyncpa %s14, 0
    loop: start=0, step=1, limit=4
    $region2: #{tpu_custom_call.1} parent=1 // loop_pre_header
      _
    $region3: #{tpu_custom_call.1} parent=1 // loop_header
      %s17 = sphi 0, %s21
      %p18 = scmp.ge.s32.totalorder %s17, 4
      %s24 = sphi 0, %s36
      %s25 = sphi 0, %s32
      %s26 = sphi 0, %s24
      %s27 = sphi 0, %s25
      %s28 = sphi 0, %s26
      %s29 = sphi 0, %s27
      %s41 = sphi 0, %s43
      %s44 = sphi 0, %s41
      %s45 = sphi 0, %s44
      %s61 = sphi 0, %s45
      %s69 = sphi 0, %s71
      %s72 = sphi 0, %s69
      %s73 = sphi 0, %s72
      %s89 = sphi 0, %s73
      %s95 = sphi 0, %s97
      %s98 = sphi 0, %s95
      %s99 = sphi 0, %s98
      %s115 = sphi 0, %s99
    $region4: #{tpu_custom_call.1} parent=1 // loop_header_branch
      %20 = sbr.rel (%p18) target = $region8
    $region5: #{tpu_custom_call.1} parent=1 // loop_body
      %s22 = ssub.s32 %s17, 1
      %s23 = ssub.s32 %s17, 2
      %s30 = sadd.s32 1, %s25
      %p31 = scmp.ge.s32.totalorder %s30, 1
      %s32 = scalar_select %p31, 0, %s30
      %s33 = sadd.s32 1, %s24
      %s34 = scalar_select %p31, %s33, %s24
      %p35 = scmp.ge.s32.totalorder %s34, 2
      %s36 = scalar_select %p35, 0, %s34
      %s37 = ssub.s32 %s24, %s36
      %s38 = ssub.s32 %s25, %s32
      %s39 = sor.u32 %s37, %s38
      %p40 = scmp.eq.s32.totalorder %s39, 0
      %s42 = sadd.s32 %s41, 1
      %s43 = scalar_select %p40, %s41, %s42
      %p46 = pneg %p40
      %p47 = scmp.eq.s32.totalorder %s17, 1
      %p48 = por %p46, %p47
      %p49 = scmp.ne.s32.totalorder %s41, %s44
      %p50 = scmp.eq.s32.totalorder %s17, 0
      %p51 = por %p49, %p50
      %p52 = scmp.ne.s32.totalorder %s41, %s44
      %p53 = scmp.eq.s32.totalorder %s22, 1
      %p54 = por %p52, %p53
      %p55 = scmp.ne.s32.totalorder %s44, %s45
      %p56 = scmp.eq.s32.totalorder %s22, 0
      %p57 = por %p55, %p56
      %p58 = scmp.ne.s32.totalorder %s44, %s45
      %p59 = scmp.eq.s32.totalorder %s23, 1
      %p60 = por %p58, %p59
      %p62 = scmp.ne.s32.totalorder %s45, %s61
      %p63 = scmp.eq.s32.totalorder %s23, 0
      %p64 = por %p62, %p63
      %s65 = ssub.s32 %s24, %s36
      %s66 = ssub.s32 %s25, %s32
      %s67 = sor.u32 %s65, %s66
      %p68 = scmp.eq.s32.totalorder %s67, 0
      %s70 = sadd.s32 %s69, 1
      %s71 = scalar_select %p68, %s69, %s70
      %p74 = pneg %p68
      %p75 = scmp.eq.s32.totalorder %s17, 1
      %p76 = por %p74, %p75
      %p77 = scmp.ne.s32.totalorder %s69, %s72
      %p78 = scmp.eq.s32.totalorder %s17, 0
      %p79 = por %p77, %p78
      %p80 = scmp.ne.s32.totalorder %s69, %s72
      %p81 = scmp.eq.s32.totalorder %s22, 1
      %p82 = por %p80, %p81
      %p83 = scmp.ne.s32.totalorder %s72, %s73
      %p84 = scmp.eq.s32.totalorder %s22, 0
      %p85 = por %p83, %p84
      %p86 = scmp.ne.s32.totalorder %s72, %s73
      %p87 = scmp.eq.s32.totalorder %s23, 1
      %p88 = por %p86, %p87
      %p90 = scmp.ne.s32.totalorder %s73, %s89
      %p91 = scmp.eq.s32.totalorder %s23, 0
      %p92 = por %p90, %p91
      %s93 = ssub.s32 %s24, %s36
      %p94 = scmp.eq.s32.totalorder %s93, 0
      %s96 = sadd.s32 %s95, 1
      %s97 = scalar_select %p94, %s95, %s96
      %p100 = pneg %p94
      %p101 = scmp.eq.s32.totalorder %s17, 1
      %p102 = por %p100, %p101
      %p103 = scmp.ne.s32.totalorder %s95, %s98
      %p104 = scmp.eq.s32.totalorder %s17, 0
      %p105 = por %p103, %p104
      %p106 = scmp.ne.s32.totalorder %s95, %s98
      %p107 = scmp.eq.s32.totalorder %s22, 1
      %p108 = por %p106, %p107
      %p109 = scmp.ne.s32.totalorder %s98, %s99
      %p110 = scmp.eq.s32.totalorder %s22, 0
      %p111 = por %p109, %p110
      %p112 = scmp.ne.s32.totalorder %s98, %s99
      %p113 = scmp.eq.s32.totalorder %s23, 1
      %p114 = por %p112, %p113
      %p116 = scmp.ne.s32.totalorder %s99, %s115
      %p117 = scmp.eq.s32.totalorder %s23, 0
      %p118 = por %p116, %p117
      %p119 = scmp.le.s32.totalorder 1, %s17
      %p120 = scmp.lt.s32.totalorder %s17, 3
      %p121 = pnand %p119, %p120
      %p122 = pneg %p121
      // Predicated region
      $region9: #{tpu_custom_call.1} parent=5 // pred_check
        _
      $region10: #{tpu_custom_call.1} parent=5 // pred_check_branch
        %124 = sbr.rel (%p121) target = $region12
      $region11: #{tpu_custom_call.1} parent=5 // pred_region
        %s125 = ssub.s32 %s17, 1
      $region12: #{tpu_custom_call.1} parent=5 // pred_fallthru
        _
      %p126 = scmp.lt.s32.totalorder %s17, 2
      // Predicated region
      $region13: #{tpu_custom_call.1} parent=5 // pred_check
        %p127 = pneg %p126
      $region14: #{tpu_custom_call.1} parent=5 // pred_check_branch
        %129 = sbr.rel (%p127) target = $region16
      $region15: #{tpu_custom_call.1} parent=5 // pred_region
        // Predicated region
        $region17: #{tpu_custom_call.1} parent=15 // pred_check
          %p130 = pneg %p51
        $region18: #{tpu_custom_call.1} parent=15 // pred_check_branch
          %132 = sbr.rel (%p130) target = $region20
        $region19: #{tpu_custom_call.1} parent=15 // pred_region
          %s133 = sand.u32 %s41, 1
          %s134 = scalar_lea.sflag [#allocation4], %s133
          %s135 = sand.u32 %s41, 1
          %s136 = smul.addr %s135, 4
          %s137 = scalar_lea.vmem [#allocation3], %s136
          %s139 = ssub.s32 64, 64
          %140 = vsyncadd %s134, %s139
          %s141 = smul.addr %s24, 2
          %s142 = sadd.s32 %s25, %s141
          %s143 = smul.addr %s142, 32
          %s144 = scalar_lea.hbm %s0, %s143
          %s145 = sshll.u32 %s137, 4
          %s146 = int_to_ptr.vmem [resolvable:$true] %s145
          %151 = dma.hbm_to_vmem [thread:$0]  %s144, 64, %s146, %s134, 32, 32, 2
        $region20: #{tpu_custom_call.1} parent=15 // pred_fallthru
          _
        // Predicated region
        $region21: #{tpu_custom_call.1} parent=15 // pred_check
          %p152 = pneg %p79
        $region22: #{tpu_custom_call.1} parent=15 // pred_check_branch
          %154 = sbr.rel (%p152) target = $region24
        $region23: #{tpu_custom_call.1} parent=15 // pred_region
          %s155 = sand.u32 %s69, 1
          %s156 = scalar_lea.sflag [#allocation7], %s155
          %s157 = sand.u32 %s69, 1
          %s158 = smul.addr %s157, 2
          %s159 = scalar_lea.vmem [#allocation6], %s158
          %s161 = ssub.s32 32, 32
          %162 = vsyncadd %s156, %s161
          %s163 = sadd.s32 %s25, %s24
          %s164 = smul.addr %s163, 32
          %s165 = scalar_lea.hbm %s1, %s164
          %s167 = sshll.u32 %s159, 4
          %s168 = int_to_ptr.vmem [resolvable:$true] %s167
          %170 = dma.hbm_to_vmem [thread:$0]  %s165, 32, %s168, %s156
        $region24: #{tpu_custom_call.1} parent=15 // pred_fallthru
          _
      $region16: #{tpu_custom_call.1} parent=5 // pred_fallthru
        _
      %p171 = scmp.le.s32.totalorder 1, %s17
      %p172 = scmp.lt.s32.totalorder %s17, 3
      %p173 = pnand %p171, %p172
      %p174 = pneg %p173
      // Predicated region
      $region25: #{tpu_custom_call.1} parent=5 // pred_check
        _
      $region26: #{tpu_custom_call.1} parent=5 // pred_check_branch
        %176 = sbr.rel (%p173) target = $region28
      $region27: #{tpu_custom_call.1} parent=5 // pred_region
        %s177 = ssub.s32 %s17, 1
        %s178 = sand.u32 %s44, 1
        %s179 = scalar_lea.sflag [#allocation4], %s178
        %s180 = sand.u32 %s44, 1
        %s181 = smul.addr %s180, 4
        %s182 = scalar_lea.vmem [#allocation3], %s181
        // Predicated region
        $region29: #{tpu_custom_call.1} parent=27 // pred_check
          %p183 = pneg %p57
        $region30: #{tpu_custom_call.1} parent=27 // pred_check_branch
          %185 = sbr.rel (%p183) target = $region32
        $region31: #{tpu_custom_call.1} parent=27 // pred_region
          %186 = dma.done %s179, 64
        $region32: #{tpu_custom_call.1} parent=27 // pred_fallthru
          _
        %s187 = sand.u32 %s72, 1
        %s188 = scalar_lea.sflag [#allocation7], %s187
        %s189 = sand.u32 %s72, 1
        %s190 = smul.addr %s189, 2
        %s191 = scalar_lea.vmem [#allocation6], %s190
        // Predicated region
        $region33: #{tpu_custom_call.1} parent=27 // pred_check
          %p192 = pneg %p85
        $region34: #{tpu_custom_call.1} parent=27 // pred_check_branch
          %194 = sbr.rel (%p192) target = $region36
        $region35: #{tpu_custom_call.1} parent=27 // pred_region
          %195 = dma.done %s188, 32
        $region36: #{tpu_custom_call.1} parent=27 // pred_fallthru
          _
        %s196 = sand.u32 %s44, 1
        %s197 = scalar_lea.sflag [#allocation4], %s196
        %s198 = sand.u32 %s44, 1
        %s199 = smul.addr %s198, 4
        %s200 = scalar_lea.vmem [#allocation3], %s199
        %p201 = pneg %p57
        %p202 = pneg %p54
        %s203 = sand.u32 %s72, 1
        %s204 = scalar_lea.sflag [#allocation7], %s203
        %s205 = sand.u32 %s72, 1
        %s206 = smul.addr %s205, 2
        %s207 = scalar_lea.vmem [#allocation6], %s206
        %p208 = pneg %p85
        %p209 = pneg %p82
        %p210 = pneg %p111
        %p211 = pneg %p108
        %s212 = sand.u32 %s98, 1
        %s213 = scalar_lea.sflag [#allocation5], %s212
        %s214 = sand.u32 %s98, 1
        %s215 = scalar_lea.vmem [#allocation8], %s214
        %p216 = scmp.eq.s32.totalorder %s27, 0
        // Predicated region
        $region37: #{tpu_custom_call.1} parent=27 // pred_check
          %p217 = pneg %p216
        $region38: #{tpu_custom_call.1} parent=27 // pred_check_branch
          %219 = sbr.rel (%p217) target = $region40
        $region39: #{tpu_custom_call.1} parent=27 // pred_region
          %220 = vst [vmem:[#allocation2] sm:$0x3] 0.0
        $region40: #{tpu_custom_call.1} parent=27 // pred_fallthru
          _
        %v221 = vld [vmem:[%s191] sm:$0x3]
        %v222 = vld [vmem:[%s182] sm:$0x3]
        %s223 = scalar_lea.vmem %s182, 2 [#allocation3]
        %v224 = vld [vmem:[%s223] sm:$0x3]
        %v225 = vmax.f32 %v222, %v224
        %v226 = vsub.f32 %v222, %v225
        %v227 = vmul.f32 %v226, 1.442695
        %v228 = vpow.pop %v227
        %v229 = vsub.f32 %v224, %v225
        %v230 = vmul.f32 %v229, 1.442695
        %v231 = vpow.pop %v230
        %v232 = vadd.f32 %v228, %v231
        %v233 = vlog2.pop %v232
        %v234 = vmul.f32 %v233, 0.6931472
        %vm235 = vcmp.eq.s32.totalorder %v221, 1
        %v236 = vsel %vm235, %v224, %v222
        %v237 = vsub.f32 %v236, %v225
        %v238 = vsub.f32 %v237, %v234
        %v239 = vmul.f32 %v238, 1.442695
        %v240 = vpow.pop %v239
        %v241 = vsel %vm235, 0.0, 1.0
        %v242 = vsub.f32 1.0, %v240
        %v243 = vmul.f32 %v242, %v242
        %v244 = vmul.f32 %v241, %v238
        %v245 = vmul.f32 %v243, %v244
        %v246 = vsub.f32 0.0, %v245
        %v247 = vlaneseq
        %v248 = vshrl.u32 %v247, 7
        %v249 = vlaneseq
        %v250 = vand.u32 %v249, 127
        %s251 = smul.u32 %s27, 2
        %v252 = vstv %s251
        %v253 = vadd.s32 %v252, %v248
        %v254 = vmul.u32 %v253, 128
        %v255 = vadd.s32 %v254, %v250
        %vm256 = vcmp.lt.s32.totalorder %v255, 256
        %v257 = vsel %vm256, %v246, 0.0
        %v258 = vld [vmem:[#allocation2] sm:$0x3]
        %v259 = vadd.f32 %v258, %v257
        %260 = vst [vmem:[#allocation2] sm:$0x3] %v259
        // Predicated region
        $region41: #{tpu_custom_call.1} parent=27 // pred_check
          %p261 = pneg %p216
        $region42: #{tpu_custom_call.1} parent=27 // pred_check_branch
          %263 = sbr.rel (%p261) target = $region44
        $region43: #{tpu_custom_call.1} parent=27 // pred_region
          %v264 = vld [vmem:[#allocation2] sm:$0x3]
          %vm265 = vcmask 1041408
          %v266 = vsel %vm265, %v264, 0.0
          %v267 = vrot.slane %v266, 4
          %v268 = vadd.f32 %v266, %v267
          %v269 = vrot.slane %v268, 2
          %v270 = vadd.f32 %v268, %v269
          %v271 = vrot.slane %v270, 1
          %v272 = vadd.f32 %v270, %v271
          %273 = vst [vmem:[%s215] sm:$0x1] %v272
        $region44: #{tpu_custom_call.1} parent=27 // pred_fallthru
          _
        %s274 = sand.u32 %s98, 1
        %s275 = scalar_lea.sflag [#allocation5], %s274
        %s276 = sand.u32 %s98, 1
        %s277 = scalar_lea.vmem [#allocation8], %s276
        // Predicated region
        $region45: #{tpu_custom_call.1} parent=27 // pred_check
          %p278 = pneg %p108
        $region46: #{tpu_custom_call.1} parent=27 // pred_check_branch
          %280 = sbr.rel (%p278) target = $region48
        $region47: #{tpu_custom_call.1} parent=27 // pred_region
          %s282 = ssub.s32 16, 16
          %283 = vsyncadd %s275, %s282
          %s284 = smul.addr %s26, 16
          %s285 = scalar_lea.hbm %s2, %s284
          %s287 = sshll.u32 %s277, 4
          %s288 = int_to_ptr.vmem [resolvable:$true] %s287
          %290 = dma.vmem_to_hbm [thread:$0]  %s288, 16, %s285, %s275
        $region48: #{tpu_custom_call.1} parent=27 // pred_fallthru
          _
      $region28: #{tpu_custom_call.1} parent=5 // pred_fallthru
        _
      %p291 = scmp.le.s32.totalorder 2, %s17
      // Predicated region
      $region49: #{tpu_custom_call.1} parent=5 // pred_check
        %p292 = pneg %p291
      $region50: #{tpu_custom_call.1} parent=5 // pred_check_branch
        %294 = sbr.rel (%p292) target = $region52
      $region51: #{tpu_custom_call.1} parent=5 // pred_region
        %s295 = ssub.s32 %s17, 2
        // Predicated region
        $region53: #{tpu_custom_call.1} parent=51 // pred_check
          %p296 = pneg %p114
        $region54: #{tpu_custom_call.1} parent=51 // pred_check_branch
          %298 = sbr.rel (%p296) target = $region56
        $region55: #{tpu_custom_call.1} parent=51 // pred_region
          %s299 = sand.u32 %s99, 1
          %s300 = scalar_lea.sflag [#allocation5], %s299
          %s301 = sand.u32 %s99, 1
          %s302 = scalar_lea.vmem [#allocation8], %s301
          %303 = dma.done %s300, 16
        $region56: #{tpu_custom_call.1} parent=51 // pred_fallthru
          _
      $region52: #{tpu_custom_call.1} parent=5 // pred_fallthru
        _
    $region6: #{tpu_custom_call.1} parent=1 // loop_footer
      %s21 = sadd.s32 1, %s17
    $region7: #{tpu_custom_call.1} parent=1 // loop_footer_branch
      %16 = sbr.rel target = $region3
    $region8: #{tpu_custom_call.1} parent=1 // loop_exit
      _
    %304 = vsyncpa [#allocation4], 1
    %s305 = scalar_lea.sflag [#allocation4], 1
    %306 = vsyncpa %s305, 1
    %307 = vsyncpa [#allocation7], 1
    %s308 = scalar_lea.sflag [#allocation7], 1
    %309 = vsyncpa %s308, 1
    %310 = vsyncpa [#allocation5], 1
    %s311 = scalar_lea.sflag [#allocation5], 1
    %312 = vsyncpa %s311, 1

</llo_original>
